<compile_context>
chip_gen: v7x
topology: tpu7x:2x2x1
jax: 0.10.0
libtpu: 0.0.40
codegen_flags: <defaults>
</compile_context>

<pallas_src>
import jax
import jax.numpy as jnp
from jax.experimental import pallas as pl
from jax.experimental.pallas import tpu as pltpu

IN_DIM = 3     # Pendulum state dim
HID = 32       # hidden width of fc1 / fc2
OUT_DIM = 1    # action dim


def munet2_kernel(x_ref, w1_ref, b1_ref, w2_ref, b2_ref, wmu_ref, bmu_ref,
                  mu_ref):
    x = x_ref[...]            # (B, 3)
    w1 = w1_ref[...]          # (3, 32)

    # fc1 on the VPU: K=3 -> three broadcast FMAs per lane (MXU skipped).
    h = (x[:, 0:1] * w1[0:1, :]
         + x[:, 1:2] * w1[1:2, :]
         + x[:, 2:3] * w1[2:3, :]
         + b1_ref[...])
    h = jnp.maximum(h, 0.0)   # (B, 32)

    # fc2 on the MXU.
    h = jnp.dot(h, w2_ref[...], preferred_element_type=jnp.float32) + b2_ref[...]
    h = jnp.maximum(h, 0.0)   # (B, 32)

    # fc_mu head + tanh (tanh runs on the EUP slot, effectively free here).
    mu = jnp.dot(h, wmu_ref[...], preferred_element_type=jnp.float32) + bmu_ref[...]
    mu_ref[...] = jnp.tanh(mu)  # (B, 1)


def _full_spec(shape):
    # Whole-array block; grid = (1,).
    return pl.BlockSpec(shape, lambda i: tuple(0 for _ in shape))


def munet2_forward(x, params):
    """x: (B, 3) float32.  Returns mu: (B, 1) float32 in (-1, 1)."""
    B = x.shape[0]
    w1, b1, w2, b2, wmu, bmu = params

    args = (x, w1, b1, w2, b2, wmu, bmu)
    in_specs = [_full_spec(a.shape) for a in args]
    out_specs = _full_spec((B, OUT_DIM))
    out_shape = jax.ShapeDtypeStruct((B, OUT_DIM), jnp.float32)

    flops = 2 * B * (IN_DIM * HID + HID * HID + HID * OUT_DIM)
    bytes_accessed = 4 * (x.size + B * OUT_DIM
                          + sum(int(p.size) for p in params))
    cost = pl.CostEstimate(flops=flops,
                           transcendentals=B * OUT_DIM,
                           bytes_accessed=bytes_accessed)

    return pl.pallas_call(
        munet2_kernel,
        grid=(1,),
        in_specs=in_specs,
        out_specs=out_specs,
        out_shape=out_shape,
        cost_estimate=cost,
        compiler_params=pltpu.CompilerParams(
            dimension_semantics=("arbitrary",)),
    )(*args)


def init_munet2_params(key):
    """Mimics nn.Linear default init (uniform +/- 1/sqrt(fan_in)).
    Weights stored pre-transposed as (in, out); biases as (1, out)."""
    shapes = [(IN_DIM, HID), (1, HID),      # fc1
              (HID, HID), (1, HID),         # fc2
              (HID, OUT_DIM), (1, OUT_DIM)]  # fc_mu
    fan_ins = [IN_DIM, IN_DIM, HID, HID, HID, HID]
    keys = jax.random.split(key, len(shapes))
    params = []
    for k, shp, fin in zip(keys, shapes, fan_ins):
        bound = 1.0 / jnp.sqrt(jnp.float32(fin))
        params.append(jax.random.uniform(k, shp, jnp.float32, -bound, bound))
    return tuple(params)


def munet2_reference(x, params):
    """Pure-JAX reference of the PyTorch forward."""
    w1, b1, w2, b2, wmu, bmu = params
    h = jax.nn.relu(x @ w1 + b1)
    h = jax.nn.relu(h @ w2 + b2)
    return jnp.tanh(h @ wmu + bmu)


if __name__ == "__main__":
    key = jax.random.PRNGKey(0)
    k_p, k_x = jax.random.split(key, 2)

    B = 8  # small batch
    params = init_munet2_params(k_p)
    x = jax.random.normal(k_x, (B, IN_DIM), jnp.float32)

    mu = munet2_forward(x, params)
    mu = jax.block_until_ready(mu)

    mu_ref = munet2_reference(x, params)
    assert mu.shape == (B, OUT_DIM)
    assert jnp.allclose(mu, mu_ref, atol=1e-5, rtol=1e-5)

    print("KERNEL_OK")
</pallas_src>

<mosaic_0001>
module attributes {stable_mosaic.version = 11 : i64} {
  func.func @munet2_kernel(%arg0: i32, %arg1: memref<8x3xf32, #tpu.memory_space<vmem>>, %arg2: memref<3x32xf32, #tpu.memory_space<vmem>>, %arg3: memref<1x32xf32, #tpu.memory_space<vmem>>, %arg4: memref<32x32xf32, #tpu.memory_space<vmem>>, %arg5: memref<1x32xf32, #tpu.memory_space<vmem>>, %arg6: memref<32x1xf32, #tpu.memory_space<vmem>>, %arg7: memref<1x1xf32, #tpu.memory_space<vmem>>, %arg8: memref<8x1xf32, #tpu.memory_space<vmem>>) attributes {dimension_semantics = [#tpu.dimension_semantics<arbitrary>], iteration_bounds = array<i64: 1>, scalar_prefetch = 0 : i64, scratch_operands = 0 : i64, tpu.core_type = #tpu.core_type<tc>, window_params = [{pipeline_mode = #tpu.pipeline_mode<synchronous>, transform_indices = @transform_0, window_bounds = array<i64: 8, 3>}, {pipeline_mode = #tpu.pipeline_mode<synchronous>, transform_indices = @transform_1, window_bounds = array<i64: 3, 32>}, {pipeline_mode = #tpu.pipeline_mode<synchronous>, transform_indices = @transform_2, window_bounds = array<i64: 1, 32>}, {pipeline_mode = #tpu.pipeline_mode<synchronous>, transform_indices = @transform_3, window_bounds = array<i64: 32, 32>}, {pipeline_mode = #tpu.pipeline_mode<synchronous>, transform_indices = @transform_4, window_bounds = array<i64: 1, 32>}, {pipeline_mode = #tpu.pipeline_mode<synchronous>, transform_indices = @transform_5, window_bounds = array<i64: 32, 1>}, {pipeline_mode = #tpu.pipeline_mode<synchronous>, transform_indices = @transform_6, window_bounds = array<i64: 1, 1>}, {pipeline_mode = #tpu.pipeline_mode<synchronous>, transform_indices = @transform_7, window_bounds = array<i64: 8, 1>}]} {
    %c0 = arith.constant 0 : index
    %c0_0 = arith.constant 0 : index
    %0 = vector.load %arg1[%c0, %c0_0] : memref<8x3xf32, #tpu.memory_space<vmem>>, vector<8x3xf32>
    %c0_1 = arith.constant 0 : index
    %c0_2 = arith.constant 0 : index
    %1 = vector.load %arg2[%c0_1, %c0_2] : memref<3x32xf32, #tpu.memory_space<vmem>>, vector<3x32xf32>
    %2 = vector.extract_strided_slice %0 {offsets = [0, 0], sizes = [8, 1], strides = [1, 1]} : vector<8x3xf32> to vector<8x1xf32>
    %3 = vector.extract_strided_slice %1 {offsets = [0, 0], sizes = [1, 32], strides = [1, 1]} : vector<3x32xf32> to vector<1x32xf32>
    %4 = vector.broadcast %2 : vector<8x1xf32> to vector<8x32xf32>
    %5 = vector.broadcast %3 : vector<1x32xf32> to vector<8x32xf32>
    %6 = arith.mulf %4, %5 : vector<8x32xf32>
    %7 = vector.extract_strided_slice %0 {offsets = [0, 1], sizes = [8, 1], strides = [1, 1]} : vector<8x3xf32> to vector<8x1xf32>
    %8 = vector.extract_strided_slice %1 {offsets = [1, 0], sizes = [1, 32], strides = [1, 1]} : vector<3x32xf32> to vector<1x32xf32>
    %9 = vector.broadcast %7 : vector<8x1xf32> to vector<8x32xf32>
    %10 = vector.broadcast %8 : vector<1x32xf32> to vector<8x32xf32>
    %11 = arith.mulf %9, %10 : vector<8x32xf32>
    %12 = arith.addf %6, %11 : vector<8x32xf32>
    %13 = vector.extract_strided_slice %0 {offsets = [0, 2], sizes = [8, 1], strides = [1, 1]} : vector<8x3xf32> to vector<8x1xf32>
    %14 = vector.extract_strided_slice %1 {offsets = [2, 0], sizes = [1, 32], strides = [1, 1]} : vector<3x32xf32> to vector<1x32xf32>
    %15 = vector.broadcast %13 : vector<8x1xf32> to vector<8x32xf32>
    %16 = vector.broadcast %14 : vector<1x32xf32> to vector<8x32xf32>
    %17 = arith.mulf %15, %16 : vector<8x32xf32>
    %18 = arith.addf %12, %17 : vector<8x32xf32>
    %c0_3 = arith.constant 0 : index
    %c0_4 = arith.constant 0 : index
    %19 = vector.load %arg3[%c0_3, %c0_4] : memref<1x32xf32, #tpu.memory_space<vmem>>, vector<1x32xf32>
    %20 = vector.broadcast %19 : vector<1x32xf32> to vector<8x32xf32>
    %21 = arith.addf %18, %20 : vector<8x32xf32>
    %cst = arith.constant 0.000000e+00 : f32
    %22 = vector.broadcast %cst : f32 to vector<8x32xf32>
    %23 = arith.maximumf %21, %22 : vector<8x32xf32>
    %c0_5 = arith.constant 0 : index
    %c0_6 = arith.constant 0 : index
    %24 = vector.load %arg4[%c0_5, %c0_6] : memref<32x32xf32, #tpu.memory_space<vmem>>, vector<32x32xf32>
    %cst_7 = arith.constant dense<0.000000e+00> : vector<8x32xf32>
    %25 = tpu.matmul %23, %24, %cst_7 {dimension_numbers = #tpu.dot_dimension_numbers<[1], [0], [0], [1], [0, 0, 1, 1], [], []>} : vector<8x32xf32>, vector<32x32xf32>, vector<8x32xf32> -> vector<8x32xf32>
    %c0_8 = arith.constant 0 : index
    %c0_9 = arith.constant 0 : index
    %26 = vector.load %arg5[%c0_8, %c0_9] : memref<1x32xf32, #tpu.memory_space<vmem>>, vector<1x32xf32>
    %27 = vector.broadcast %26 : vector<1x32xf32> to vector<8x32xf32>
    %28 = arith.addf %25, %27 : vector<8x32xf32>
    %cst_10 = arith.constant 0.000000e+00 : f32
    %29 = vector.broadcast %cst_10 : f32 to vector<8x32xf32>
    %30 = arith.maximumf %28, %29 : vector<8x32xf32>
    %c0_11 = arith.constant 0 : index
    %c0_12 = arith.constant 0 : index
    %31 = vector.load %arg6[%c0_11, %c0_12] : memref<32x1xf32, #tpu.memory_space<vmem>>, vector<32x1xf32>
    %cst_13 = arith.constant dense<0.000000e+00> : vector<8x1xf32>
    %32 = tpu.matmul %30, %31, %cst_13 {dimension_numbers = #tpu.dot_dimension_numbers<[1], [0], [0], [1], [0, 0, 1, 1], [], []>} : vector<8x32xf32>, vector<32x1xf32>, vector<8x1xf32> -> vector<8x1xf32>
    %c0_14 = arith.constant 0 : index
    %c0_15 = arith.constant 0 : index
    %33 = vector.load %arg7[%c0_14, %c0_15] : memref<1x1xf32, #tpu.memory_space<vmem>>, vector<1x1xf32>
    %34 = vector.broadcast %33 : vector<1x1xf32> to vector<8x1xf32>
    %35 = arith.addf %32, %34 : vector<8x1xf32>
    %36 = math.tanh %35 : vector<8x1xf32>
    %c0_16 = arith.constant 0 : index
    %c0_17 = arith.constant 0 : index
    %37 = vector.load %arg8[%c0_16, %c0_17] : memref<8x1xf32, #tpu.memory_space<vmem>>, vector<8x1xf32>
    tpu.vector_store %arg8[%c0_16, %c0_17], %36 {strides = array<i32>} : memref<8x1xf32, #tpu.memory_space<vmem>>, vector<8x1xf32>,
    return
  }
  func.func @transform_0(%arg0: i32) -> (i32, i32) {
    %c0_i32 = arith.constant 0 : i32
    %c0_i32_0 = arith.constant 0 : i32
    %c0_i32_1 = arith.constant 0 : i32
    return %c0_i32, %c0_i32_0 : i32, i32
  }
  func.func @transform_1(%arg0: i32) -> (i32, i32) {
    %c0_i32 = arith.constant 0 : i32
    %c0_i32_0 = arith.constant 0 : i32
    %c0_i32_1 = arith.constant 0 : i32
    return %c0_i32, %c0_i32_0 : i32, i32
  }
  func.func @transform_2(%arg0: i32) -> (i32, i32) {
    %c0_i32 = arith.constant 0 : i32
    %c0_i32_0 = arith.constant 0 : i32
    %c0_i32_1 = arith.constant 0 : i32
    return %c0_i32, %c0_i32_0 : i32, i32
  }
  func.func @transform_3(%arg0: i32) -> (i32, i32) {
    %c0_i32 = arith.constant 0 : i32
    %c0_i32_0 = arith.constant 0 : i32
    %c0_i32_1 = arith.constant 0 : i32
    return %c0_i32, %c0_i32_0 : i32, i32
  }
  func.func @transform_4(%arg0: i32) -> (i32, i32) {
    %c0_i32 = arith.constant 0 : i32
    %c0_i32_0 = arith.constant 0 : i32
    %c0_i32_1 = arith.constant 0 : i32
    return %c0_i32, %c0_i32_0 : i32, i32
  }
  func.func @transform_5(%arg0: i32) -> (i32, i32) {
    %c0_i32 = arith.constant 0 : i32
    %c0_i32_0 = arith.constant 0 : i32
    %c0_i32_1 = arith.constant 0 : i32
    return %c0_i32, %c0_i32_0 : i32, i32
  }
  func.func @transform_6(%arg0: i32) -> (i32, i32) {
    %c0_i32 = arith.constant 0 : i32
    %c0_i32_0 = arith.constant 0 : i32
    %c0_i32_1 = arith.constant 0 : i32
    return %c0_i32, %c0_i32_0 : i32, i32
  }
  func.func @transform_7(%arg0: i32) -> (i32, i32) {
    %c0_i32 = arith.constant 0 : i32
    %c0_i32_0 = arith.constant 0 : i32
    %c0_i32_1 = arith.constant 0 : i32
    return %c0_i32, %c0_i32_0 : i32, i32
  }
}

</mosaic_0001>

<llo_original>
// kernel: tpu_custom_call.1
$region0: #{tpu_custom_call.1}
  #allocation0 [shape = 'u32[]', space=smem, size = 0x4, offset = 0x4, fixed_abs, tag = 'smem constant byte address 0x4 - core index']
  #allocation1 [shape = 'u32[144,128]{1,0:T(1,128)}', space=vmem, size = 0x12000, scoped, tag = 'internal scratch']
  #allocation2 [shape = 'f32[1,1]{1,0:T(1,128)S(1)}', space=vmem, size = 0x200, scoped, tag = 'scoped memory for tpu_custom_call.1']
  %s0 = inlined_call_operand.vmem [shape: f32[8,3], index: 0, kind: input, shape index: {}]
  %s1 = inlined_call_operand.vmem [shape: f32[3,32], index: 1, kind: input, shape index: {}]
  %s2 = inlined_call_operand.vmem [shape: f32[1,32], index: 2, kind: input, shape index: {}]
  %s3 = inlined_call_operand.vmem [shape: f32[32,32], index: 3, kind: input, shape index: {}]
  %s4 = inlined_call_operand.vmem [shape: f32[1,32], index: 4, kind: input, shape index: {}]
  %s5 = inlined_call_operand.vmem [shape: f32[32,1], index: 5, kind: input, shape index: {}]
  %s6 = inlined_call_operand.<no memory space> [shape: f32[1,1], index: 6, kind: input, shape index: {}]
  %s7 = inlined_call_operand.vmem [shape: f32[8,1], index: 7, kind: output, shape index: {}]
  %s8 = sld [smem:[#allocation0]]
  $region38: #{tpu_custom_call.1} parent=0
    _
  %s10 = ssub.s32 1, %s8
  %s11 = scalar_select 0, %s10, %s8
  %v12 = vstv %s6
  %13 = vst [vmem:[#allocation2] sm:$0x1] %v12
  // Predicated region
  $region2: #{tpu_custom_call.1} parent=0 // pred_check
    _
  $region3: #{tpu_custom_call.1} parent=0 // pred_check_branch
    %15 = sbr.rel (0) target = $region5
  $region4: #{tpu_custom_call.1} parent=0 // pred_region
    _
  $region5: #{tpu_custom_call.1} parent=0 // pred_fallthru
    _
  // Predicated region
  $region6: #{tpu_custom_call.1} parent=0 // pred_check
    _
  $region7: #{tpu_custom_call.1} parent=0 // pred_check_branch
    %17 = sbr.rel (0) target = $region9
  $region8: #{tpu_custom_call.1} parent=0 // pred_region
    _
  $region9: #{tpu_custom_call.1} parent=0 // pred_fallthru
    _
  // Predicated region
  $region10: #{tpu_custom_call.1} parent=0 // pred_check
    _
  $region11: #{tpu_custom_call.1} parent=0 // pred_check_branch
    %19 = sbr.rel (0) target = $region13
  $region12: #{tpu_custom_call.1} parent=0 // pred_region
    _
  $region13: #{tpu_custom_call.1} parent=0 // pred_fallthru
    _
  // Predicated region
  $region14: #{tpu_custom_call.1} parent=0 // pred_check
    _
  $region15: #{tpu_custom_call.1} parent=0 // pred_check_branch
    %21 = sbr.rel (0) target = $region17
  $region16: #{tpu_custom_call.1} parent=0 // pred_region
    _
  $region17: #{tpu_custom_call.1} parent=0 // pred_fallthru
    _
  // Predicated region
  $region18: #{tpu_custom_call.1} parent=0 // pred_check
    _
  $region19: #{tpu_custom_call.1} parent=0 // pred_check_branch
    %23 = sbr.rel (0) target = $region21
  $region20: #{tpu_custom_call.1} parent=0 // pred_region
    _
  $region21: #{tpu_custom_call.1} parent=0 // pred_fallthru
    _
  // Predicated region
  $region22: #{tpu_custom_call.1} parent=0 // pred_check
    _
  $region23: #{tpu_custom_call.1} parent=0 // pred_check_branch
    %25 = sbr.rel (0) target = $region25
  $region24: #{tpu_custom_call.1} parent=0 // pred_region
    _
  $region25: #{tpu_custom_call.1} parent=0 // pred_fallthru
    _
  // Predicated region
  $region26: #{tpu_custom_call.1} parent=0 // pred_check
    _
  $region27: #{tpu_custom_call.1} parent=0 // pred_check_branch
    %27 = sbr.rel (0) target = $region29
  $region28: #{tpu_custom_call.1} parent=0 // pred_region
    _
  $region29: #{tpu_custom_call.1} parent=0 // pred_fallthru
    _
  %v28 = vld [vmem:[%s0] sm:$0xff]
  %v29 = vld [vmem:[%s1] sm:$0x7]
  %31 = vset.pattern.permute.xlu0 0
  %32 = vperm.xlu0 %31, %v28
  %v33 = vpop.permute.xlu0 %32
  %v35 = vlaneseq
  %v36 = vshrl.u32 %v35, 7
  %v37 = vsub.s32 0, %v36
  %v38 = vrot.slane %v29, %v37
  %v39 = vmul.f32 %v33, %v38
  %40 = vset.pattern.permute.xlu0 1
  %41 = vperm.xlu0 %40, %v28
  %v42 = vpop.permute.xlu0 %41
  %v44 = vlaneseq
  %v45 = vshrl.u32 %v44, 7
  %v46 = vsub.s32 1, %v45
  %v47 = vrot.slane %v29, %v46
  %v48 = vmul.f32 %v42, %v47
  %v49 = vadd.f32 %v39, %v48
  %50 = vset.pattern.permute.xlu0 2
  %51 = vperm.xlu0 %50, %v28
  %v52 = vpop.permute.xlu0 %51
  %v54 = vlaneseq
  %v55 = vshrl.u32 %v54, 7
  %v56 = vsub.s32 2, %v55
  %v57 = vrot.slane %v29, %v56
  %v58 = vmul.f32 %v52, %v57
  %v59 = vadd.f32 %v49, %v58
  %v60 = vld [vmem:[%s2] sm:$0x1]
  %v62 = vlaneseq
  %v63 = vshrl.u32 %v62, 7
  %v64 = vsub.s32 0, %v63
  %v65 = vrot.slane %v60, %v64
  %v67 = vadd.f32 %v59, %v65
  %v68 = vmax.f32 %v67, 0.0
  %v69 = vld [vmem:[%s3] sm:$0xff]
  %v70 = vld [vmem:[%s3 + $0x8] sm:$0xff]
  %v71 = vld [vmem:[%s3 + $0x10] sm:$0xff]
  %v72 = vld [vmem:[%s3 + $0x18] sm:$0xff]
  %v73 = vld [vmem:[%s4] sm:$0x1]
  %v75 = vlaneseq
  %v76 = vshrl.u32 %v75, 7
  %v77 = vsub.s32 0, %v76
  %v78 = vrot.slane %v73, %v77
  %vm80 = vcmask 261120
  %v82 = vsel %vm80, %v68, 0
  %84 = vmatprep.subr.mxu0 0.0
  %85 = vmatpush1.msra.mxu0 %v69
  %86 = vmatprep.subr.mxu0 0.0
  %87 = vmatpush1.msra.mxu0 %v70
  %88 = vmatprep.subr.mxu0 0.0
  %89 = vmatpush1.msra.mxu0 %v71
  %90 = vmatprep.subr.mxu0 0.0
  %91 = vmatpush1.msra.mxu0 %v72
  %92 = vmatprep.subr.mxu0 0.0
  %93 = vmatpush1.msra.mxu0 0.0
  %94 = vmatprep.subr.mxu0 0.0
  %95 = vmatpush1.msra.mxu0 0.0
  %96 = vmatprep.subr.mxu0 0.0
  %97 = vmatpush1.msra.mxu0 0.0
  %98 = vmatprep.subr.mxu0 0.0
  %99 = vmatpush1.msra.mxu0 0.0
  %100 = vmatprep.subr.mxu0 0.0
  %101 = vmatpush1.msra.mxu0 0.0
  %102 = vmatprep.subr.mxu0 0.0
  %103 = vmatpush1.msra.mxu0 0.0
  %104 = vmatprep.subr.mxu0 0.0
  %105 = vmatpush1.msra.mxu0 0.0
  %106 = vmatprep.subr.mxu0 0.0
  %107 = vmatpush1.msra.mxu0 0.0
  %108 = vmatprep.subr.mxu0 0.0
  %109 = vmatpush1.msra.mxu0 0.0
  %110 = vmatprep.subr.mxu0 0.0
  %111 = vmatpush1.msra.mxu0 0.0
  %112 = vmatprep.subr.mxu0 0.0
  %113 = vmatpush1.msra.mxu0 0.0
  %114 = vmatprep.subr.mxu0 0.0
  %115 = vmatpush1.msra.mxu0 0.0
  %116 = vmatprep.subr.mxu0 0.0
  %117 = vmatpush1.msra.mxu0 0.0
  %118 = vmatprep.subr.mxu0 0.0
  %119 = vmatpush1.msra.mxu0 0.0
  %120 = vmatprep.subr.mxu0 0.0
  %121 = vmatpush1.msra.mxu0 0.0
  %122 = vmatprep.subr.mxu0 0.0
  %123 = vmatpush1.msra.mxu0 0.0
  %124 = vmatprep.subr.mxu0 0.0
  %125 = vmatpush1.msra.mxu0 0.0
  %126 = vmatprep.subr.mxu0 0.0
  %127 = vmatpush1.msra.mxu0 0.0
  %128 = vmatprep.subr.mxu0 0.0
  %129 = vmatpush1.msra.mxu0 0.0
  %130 = vmatprep.subr.mxu0 0.0
  %131 = vmatpush1.msra.mxu0 0.0
  %132 = vmatprep.subr.mxu0 0.0
  %133 = vmatpush1.msra.mxu0 0.0
  %134 = vmatprep.subr.mxu0 0.0
  %135 = vmatpush1.msra.mxu0 0.0
  %136 = vmatprep.subr.mxu0 0.0
  %137 = vmatpush1.msra.mxu0 0.0
  %138 = vmatprep.subr.mxu0 0.0
  %139 = vmatpush1.msra.mxu0 0.0
  %140 = vmatprep.subr.mxu0 0.0
  %141 = vmatpush1.msra.mxu0 0.0
  %142 = vmatprep.subr.mxu0 0.0
  %143 = vmatpush1.msra.mxu0 0.0
  %144 = vmatprep.subr.mxu0 0.0
  %145 = vmatpush1.msra.mxu0 0.0
  %146 = vmatprep.subr.mxu0 0.0
  %147 = vmatpush1.msra.mxu0 0.0
  %148 = vmatprep.mubr.f32.mxu0 0.0
  %149 = vmatmul.mubr.f32.gmra.mrb[0].mxu0 %v82
  %v150 = vpop.f32.mrb[0].mxu0
  %v151 = vadd.f32 %v78, %v150
  %v152 = vpop.f32.mrb[0].mxu0
  %153 = vdwg.mxu0
  %v154 = vmax.f32 %v151, 0.0
  %v155 = vld [vmem:[%s5] sm:$0xff]
  %v156 = vld [vmem:[%s5 + $0x8] sm:$0xff]
  %v157 = vld [vmem:[%s5 + $0x10] sm:$0xff]
  %v158 = vld [vmem:[%s5 + $0x18] sm:$0xff]
  %v159 = vld [vmem:[#allocation2] sm:$0x1]
  %v161 = vlaneseq
  %v162 = vshrl.u32 %v161, 7
  %v163 = vsub.s32 0, %v162
  %v164 = vrot.slane %v159, %v163
  %v167 = vsel %vm80, %v154, 0
  %169 = vmatprep.subr.mxu0 0.0
  %170 = vmatpush1.msra.mxu0 %v155
  %171 = vmatprep.subr.mxu0 0.0
  %172 = vmatpush1.msra.mxu0 %v156
  %173 = vmatprep.subr.mxu0 0.0
  %174 = vmatpush1.msra.mxu0 %v157
  %175 = vmatprep.subr.mxu0 0.0
  %176 = vmatpush1.msra.mxu0 %v158
  %177 = vmatprep.subr.mxu0 0.0
  %178 = vmatpush1.msra.mxu0 0.0
  %179 = vmatprep.subr.mxu0 0.0
  %180 = vmatpush1.msra.mxu0 0.0
  %181 = vmatprep.subr.mxu0 0.0
  %182 = vmatpush1.msra.mxu0 0.0
  %183 = vmatprep.subr.mxu0 0.0
  %184 = vmatpush1.msra.mxu0 0.0
  %185 = vmatprep.subr.mxu0 0.0
  %186 = vmatpush1.msra.mxu0 0.0
  %187 = vmatprep.subr.mxu0 0.0
  %188 = vmatpush1.msra.mxu0 0.0
  %189 = vmatprep.subr.mxu0 0.0
  %190 = vmatpush1.msra.mxu0 0.0
  %191 = vmatprep.subr.mxu0 0.0
  %192 = vmatpush1.msra.mxu0 0.0
  %193 = vmatprep.subr.mxu0 0.0
  %194 = vmatpush1.msra.mxu0 0.0
  %195 = vmatprep.subr.mxu0 0.0
  %196 = vmatpush1.msra.mxu0 0.0
  %197 = vmatprep.subr.mxu0 0.0
  %198 = vmatpush1.msra.mxu0 0.0
  %199 = vmatprep.subr.mxu0 0.0
  %200 = vmatpush1.msra.mxu0 0.0
  %201 = vmatprep.subr.mxu0 0.0
  %202 = vmatpush1.msra.mxu0 0.0
  %203 = vmatprep.subr.mxu0 0.0
  %204 = vmatpush1.msra.mxu0 0.0
  %205 = vmatprep.subr.mxu0 0.0
  %206 = vmatpush1.msra.mxu0 0.0
  %207 = vmatprep.subr.mxu0 0.0
  %208 = vmatpush1.msra.mxu0 0.0
  %209 = vmatprep.subr.mxu0 0.0
  %210 = vmatpush1.msra.mxu0 0.0
  %211 = vmatprep.subr.mxu0 0.0
  %212 = vmatpush1.msra.mxu0 0.0
  %213 = vmatprep.subr.mxu0 0.0
  %214 = vmatpush1.msra.mxu0 0.0
  %215 = vmatprep.subr.mxu0 0.0
  %216 = vmatpush1.msra.mxu0 0.0
  %217 = vmatprep.subr.mxu0 0.0
  %218 = vmatpush1.msra.mxu0 0.0
  %219 = vmatprep.subr.mxu0 0.0
  %220 = vmatpush1.msra.mxu0 0.0
  %221 = vmatprep.subr.mxu0 0.0
  %222 = vmatpush1.msra.mxu0 0.0
  %223 = vmatprep.subr.mxu0 0.0
  %224 = vmatpush1.msra.mxu0 0.0
  %225 = vmatprep.subr.mxu0 0.0
  %226 = vmatpush1.msra.mxu0 0.0
  %227 = vmatprep.subr.mxu0 0.0
  %228 = vmatpush1.msra.mxu0 0.0
  %229 = vmatprep.subr.mxu0 0.0
  %230 = vmatpush1.msra.mxu0 0.0
  %231 = vmatprep.subr.mxu0 0.0
  %232 = vmatpush1.msra.mxu0 0.0
  %233 = vmatprep.mubr.f32.mxu0 0.0
  %234 = vmatmul.mubr.f32.gmra.mrb[0].mxu0 %v167
  %v235 = vpop.f32.mrb[0].mxu0
  %v236 = vadd.f32 %v164, %v235
  %v237 = vpop.f32.mrb[0].mxu0
  %238 = vdwg.mxu0
  %v239 = vtanh.pop %v236
  %vm240 = vcmask 7168
  %241 = vst.msk [vmem:[%s7] sm:$0xff] %vm240, %v239
  // Predicated region
  $region30: #{tpu_custom_call.1} parent=0 // pred_check
    _
  $region31: #{tpu_custom_call.1} parent=0 // pred_check_branch
    %243 = sbr.rel (0) target = $region33
  $region32: #{tpu_custom_call.1} parent=0 // pred_region
    _
  $region33: #{tpu_custom_call.1} parent=0 // pred_fallthru
    _
  // Predicated region
  $region34: #{tpu_custom_call.1} parent=0 // pred_check
    _
  $region35: #{tpu_custom_call.1} parent=0 // pred_check_branch
    %245 = sbr.rel (0) target = $region37
  $region36: #{tpu_custom_call.1} parent=0 // pred_region
    _
  $region37: #{tpu_custom_call.1} parent=0 // pred_fallthru
    _

</llo_original>
